<compile_context>
chip_gen: v7x
topology: tpu7x:2x2x1
jax: 0.10.0
libtpu: 0.0.40
codegen_flags: <defaults>
</compile_context>

<pallas_src>
import math

import jax
import jax.numpy as jnp
from jax.experimental import pallas as pl
from jax.experimental.pallas import tpu as pltpu


def audio_decoder(x, weight, bias=None, *, stride):
    """x: (B, N, T) f32, weight: (N, 1, K) f32, bias: (1,) f32 (unused, see note).

    Returns the peak-normalized ConvTranspose1d output of shape (B, (T-1)*stride + K).
    `bias` is accepted for API parity with nn.ConvTranspose1d but not applied:
    a uniform scalar bias cancels exactly under the global mean subtraction.
    """
    B, N, T = x.shape
    K = weight.shape[2]
    S = stride
    if K % S != 0:
        raise NotImplementedError("kernel assumes kernel_size % stride == 0")
    R = K // S                  # taps per output frame (typically 2)
    F = T + R - 1               # number of stride-sized output frames
    L = (T - 1) * S + K         # ConvTranspose1d output length (== F * S)

    # Pad the frame axis so stores are sublane-aligned and the flat per-row
    # length F_pad*S is a multiple of 128 lanes (free reshape to lane-dense).
    mult = math.lcm(8, 128 // S) if 128 % S == 0 else 8
    F_pad = ((F + mult - 1) // mult) * mult

    xf = x.astype(jnp.float32)                       # (B, N, T) native layout
    w = weight[:, 0, :].astype(jnp.float32)          # (N, K)

    # ------------------------------------------------------------------ pass 1
    # Per-batch-item: MXU frame projection + register overlap-add + partial stats.
    def conv_kernel(x_ref, w_ref, out_ref, stats_ref):
        # x_ref: (N, T)  w_ref: (N, K)  out_ref: (F_pad, S)  stats_ref: (3, S)
        y = jnp.dot(x_ref[...].T, w_ref[...],
                    preferred_element_type=jnp.float32)            # (T, K) on MXU

        # Overlap-add entirely in registers: output frame (t + r) accumulates
        # tap segment r of input frame t.  R is tiny, so this unrolls to a
        # couple of shifted adds; out_ref is written exactly once below.
        acc = jnp.zeros((F_pad, S), jnp.float32)
        for r in range(R):
            seg = y[:, r * S:(r + 1) * S]                          # (T, S)
            pieces = []
            if r:
                pieces.append(jnp.zeros((r, S), jnp.float32))
            pieces.append(seg)
            tail = F_pad - T - r
            if tail:
                pieces.append(jnp.zeros((tail, S), jnp.float32))
            acc = acc + (pieces[0] if len(pieces) == 1
                         else jnp.concatenate(pieces, axis=0))
        out_ref[...] = acc                                          # single store

        # Per-step partial statistics over the REAL L elements.  Padded frames
        # (index >= F) are exactly zero, so the sum is unaffected; mask them
        # out of min/max so all-positive / all-negative signals stay correct.
        frame = jax.lax.broadcasted_iota(jnp.int32, (F_pad, S), 0)
        valid = frame < F
        stats_ref[0:1, :] = jnp.sum(acc, axis=0, keepdims=True)
        stats_ref[1:2, :] = jnp.min(jnp.where(valid, acc, jnp.inf),
                                    axis=0, keepdims=True)
        stats_ref[2:3, :] = jnp.max(jnp.where(valid, acc, -jnp.inf),
                                    axis=0, keepdims=True)

    conv_framed, stats = pl.pallas_call(
        conv_kernel,
        out_shape=(jax.ShapeDtypeStruct((B, F_pad, S), jnp.float32),
                   jax.ShapeDtypeStruct((B, 3, S), jnp.float32)),
        grid=(B,),
        in_specs=[
            pl.BlockSpec((None, N, T), lambda b: (b, 0, 0)),   # x, native layout
            pl.BlockSpec((N, K), lambda b: (0, 0)),            # weight (resident)
        ],
        out_specs=(
            pl.BlockSpec((None, F_pad, S), lambda b: (b, 0, 0)),
            pl.BlockSpec((None, 3, S), lambda b: (b, 0, 0)),
        ),
        compiler_params=pltpu.CompilerParams(dimension_semantics=("parallel",)),
        cost_estimate=pl.CostEstimate(
            flops=2 * B * N * T * K + B * R * F_pad * S,
            transcendentals=0,
            bytes_accessed=4 * (B * N * T + N * K + B * F_pad * S + B * 3 * S)),
    )(xf, w)

    # ------------------------------------------------- tiny stats merge (jnp)
    mean = jnp.sum(stats[:, 0, :]) / (B * L)
    gmin = jnp.min(stats[:, 1, :])
    gmax = jnp.max(stats[:, 2, :])
    # max |x - mean| == max(gmax - mean, mean - gmin); eps guard documented above.
    maxabs = jnp.maximum(jnp.maximum(gmax - mean, mean - gmin), 1e-12)
    scal = jnp.stack([mean, 1.0 / maxabs]).reshape(1, 2).astype(jnp.float32)

    # ------------------------------------------------------------------ pass 2
    # Apply (x - mean) * inv, tiled over the same grid.
    def norm_kernel(y_ref, scal_ref, o_ref):
        # y_ref/o_ref: (F_pad, S)   scal_ref: (1, 2) = [mean, 1/maxabs] in SMEM
        o_ref[...] = (y_ref[...] - scal_ref[0, 0]) * scal_ref[0, 1]

    normed = pl.pallas_call(
        norm_kernel,
        out_shape=jax.ShapeDtypeStruct((B, F_pad, S), jnp.float32),
        grid=(B,),
        in_specs=[
            pl.BlockSpec((None, F_pad, S), lambda b: (b, 0, 0)),
            pl.BlockSpec(memory_space=pltpu.MemorySpace.SMEM),
        ],
        out_specs=pl.BlockSpec((None, F_pad, S), lambda b: (b, 0, 0)),
        compiler_params=pltpu.CompilerParams(dimension_semantics=("parallel",)),
        cost_estimate=pl.CostEstimate(
            flops=2 * B * F_pad * S,
            transcendentals=0,
            bytes_accessed=4 * (2 * B * F_pad * S + 2)),
    )(conv_framed, scal)

    # Framed (B, F_pad, S) -> flat (B, F_pad*S) is a contiguous (free) reshape;
    # drop the zero-padded tail frames to get the exact (B, L) output.
    return normed.reshape(B, F_pad * S)[:, :L]


def ref_audio_decoder(x, weight, bias, *, stride):
    """Pure-JAX reference mirroring torch ConvTranspose1d + peak_normalize."""
    B, N, T = x.shape
    K = weight.shape[2]
    L = (T - 1) * stride + K
    y = jnp.einsum("bnt,nk->btk", x, weight[:, 0, :])
    out = jnp.zeros((B, L), jnp.float32)
    for t in range(T):
        out = out.at[:, t * stride:t * stride + K].add(y[:, t, :])
    out = out + bias[0]
    out = out - jnp.mean(out)
    return out / jnp.max(jnp.abs(out))


if __name__ == "__main__":
    # ConvTranspose1d(in_channels=N, out_channels=1, kernel_size=K, stride=S)
    B, N, T = 2, 32, 8
    K, S = 16, 8

    key = jax.random.PRNGKey(0)
    kx, kw, kb = jax.random.split(key, 3)
    x = jax.random.normal(kx, (B, N, T), dtype=jnp.float32)
    weight = jax.random.normal(kw, (N, 1, K), dtype=jnp.float32) * 0.1  # (in, out, K)
    bias = jax.random.normal(kb, (1,), dtype=jnp.float32) * 0.1

    out = jax.block_until_ready(audio_decoder(x, weight, bias, stride=S))
    ref = ref_audio_decoder(x, weight, bias, stride=S)

    assert out.shape == (B, (T - 1) * S + K)
    assert jnp.allclose(out, ref, atol=1e-4, rtol=1e-4), float(jnp.max(jnp.abs(out - ref)))
    print("KERNEL_OK")
</pallas_src>

<mosaic_0001>
module attributes {stable_mosaic.version = 11 : i64} {
  func.func @conv_kernel(%arg0: i32, %arg1: memref<1x32x8xf32, #tpu.memory_space<vmem>>, %arg2: memref<32x16xf32, #tpu.memory_space<vmem>>, %arg3: memref<1x16x8xf32, #tpu.memory_space<vmem>>, %arg4: memref<1x3x8xf32, #tpu.memory_space<vmem>>) attributes {dimension_semantics = [#tpu.dimension_semantics<parallel>], iteration_bounds = array<i64: 2>, scalar_prefetch = 0 : i64, scratch_operands = 0 : i64, tpu.core_type = #tpu.core_type<tc>, window_params = [{transform_indices = @transform_0, window_bounds = array<i64: 1, 32, 8>}, {pipeline_mode = #tpu.pipeline_mode<synchronous>, transform_indices = @transform_1, window_bounds = array<i64: 32, 16>}, {transform_indices = @transform_2, window_bounds = array<i64: 1, 16, 8>}, {transform_indices = @transform_3, window_bounds = array<i64: 1, 3, 8>}]} {
    %c0 = arith.constant 0 : index
    %c0_0 = arith.constant 0 : index
    %c0_1 = arith.constant 0 : index
    %0 = vector.load %arg1[%c0, %c0_0, %c0_1] : memref<1x32x8xf32, #tpu.memory_space<vmem>>, vector<1x32x8xf32>
    %1 = vector.shape_cast %0 : vector<1x32x8xf32> to vector<32x8xf32>
    %2 = tpu.transpose %1, [1, 0] : vector<32x8xf32> -> vector<8x32xf32>
    %c0_2 = arith.constant 0 : index
    %c0_3 = arith.constant 0 : index
    %3 = vector.load %arg2[%c0_2, %c0_3] : memref<32x16xf32, #tpu.memory_space<vmem>>, vector<32x16xf32>
    %cst = arith.constant dense<0.000000e+00> : vector<8x16xf32>
    %4 = tpu.matmul %2, %3, %cst {dimension_numbers = #tpu.dot_dimension_numbers<[1], [0], [0], [1], [0, 0, 1, 1], [], []>} : vector<8x32xf32>, vector<32x16xf32>, vector<8x16xf32> -> vector<8x16xf32>
    %cst_4 = arith.constant 0.000000e+00 : f32
    %5 = vector.broadcast %cst_4 : f32 to vector<16x8xf32>
    %6 = vector.extract_strided_slice %4 {offsets = [0, 0], sizes = [8, 8], strides = [1, 1]} : vector<8x16xf32> to vector<8x8xf32>
    %cst_5 = arith.constant 0.000000e+00 : f32
    %7 = vector.broadcast %cst_5 : f32 to vector<8x8xf32>
    %8 = tpu.concatenate %6, %7 in 0 : vector<8x8xf32>, vector<8x8xf32> -> vector<16x8xf32>
    %9 = arith.addf %5, %8 : vector<16x8xf32>
    %10 = vector.extract_strided_slice %4 {offsets = [0, 8], sizes = [8, 8], strides = [1, 1]} : vector<8x16xf32> to vector<8x8xf32>
    %cst_6 = arith.constant 0.000000e+00 : f32
    %11 = vector.broadcast %cst_6 : f32 to vector<1x8xf32>
    %cst_7 = arith.constant 0.000000e+00 : f32
    %12 = vector.broadcast %cst_7 : f32 to vector<7x8xf32>
    %13 = tpu.concatenate %11, %10, %12 in 0 : vector<1x8xf32>, vector<8x8xf32>, vector<7x8xf32> -> vector<16x8xf32>
    %14 = arith.addf %9, %13 : vector<16x8xf32>
    %c0_8 = arith.constant 0 : index
    %c0_9 = arith.constant 0 : index
    %c0_10 = arith.constant 0 : index
    %15 = vector.load %arg3[%c0_8, %c0_9, %c0_10] : memref<1x16x8xf32, #tpu.memory_space<vmem>>, vector<1x16x8xf32>
    %16 = vector.shape_cast %15 : vector<1x16x8xf32> to vector<16x8xf32>
    %17 = vector.shape_cast %14 : vector<16x8xf32> to vector<1x16x8xf32>
    tpu.vector_store %arg3[%c0_8, %c0_9, %c0_10], %17 {strides = array<i32>} : memref<1x16x8xf32, #tpu.memory_space<vmem>>, vector<1x16x8xf32>,
    %18 = tpu.iota {dimensions = array<i32: 0>} : vector<16x8xi32>
    %c9_i32 = arith.constant 9 : i32
    %19 = vector.broadcast %c9_i32 : i32 to vector<16x8xi32>
    %20 = arith.cmpi slt, %18, %19 : vector<16x8xi32>
    %cst_11 = arith.constant dense<0.000000e+00> : vector<8xf32>
    %21 = vector.multi_reduction <add>, %14, %cst_11 [0] : vector<16x8xf32> to vector<8xf32>
    %22 = vector.shape_cast %21 : vector<8xf32> to vector<1x8xf32>
    %c0_12 = arith.constant 0 : index
    %c0_13 = arith.constant 0 : index
    %c0_14 = arith.constant 0 : index
    %23 = vector.load %arg4[%c0_12, %c0_13, %c0_14] : memref<1x3x8xf32, #tpu.memory_space<vmem>>, vector<1x1x8xf32>
    %24 = vector.shape_cast %23 : vector<1x1x8xf32> to vector<1x8xf32>
    %25 = vector.shape_cast %22 : vector<1x8xf32> to vector<1x1x8xf32>
    tpu.vector_store %arg4[%c0_12, %c0_13, %c0_14], %25 {strides = array<i32>} : memref<1x3x8xf32, #tpu.memory_space<vmem>>, vector<1x1x8xf32>,
    %cst_15 = arith.constant 0x7F800000 : f32
    %26 = vector.broadcast %cst_15 : f32 to vector<16x8xf32>
    %27 = arith.select %20, %14, %26 : vector<16x8xi1>, vector<16x8xf32>
    %cst_16 = arith.constant dense<0x7F800000> : vector<8xf32>
    %28 = vector.multi_reduction <minimumf>, %27, %cst_16 [0] : vector<16x8xf32> to vector<8xf32>
    %29 = vector.shape_cast %28 : vector<8xf32> to vector<1x8xf32>
    %c0_17 = arith.constant 0 : index
    %c1 = arith.constant 1 : index
    %c0_18 = arith.constant 0 : index
    %30 = vector.load %arg4[%c0_17, %c1, %c0_18] : memref<1x3x8xf32, #tpu.memory_space<vmem>>, vector<1x1x8xf32>
    %31 = vector.shape_cast %30 : vector<1x1x8xf32> to vector<1x8xf32>
    %32 = vector.shape_cast %29 : vector<1x8xf32> to vector<1x1x8xf32>
    tpu.vector_store %arg4[%c0_17, %c1, %c0_18], %32 {strides = array<i32>} : memref<1x3x8xf32, #tpu.memory_space<vmem>>, vector<1x1x8xf32>,
    %cst_19 = arith.constant 0xFF800000 : f32
    %33 = vector.broadcast %cst_19 : f32 to vector<16x8xf32>
    %34 = arith.select %20, %14, %33 : vector<16x8xi1>, vector<16x8xf32>
    %cst_20 = arith.constant dense<0xFF800000> : vector<8xf32>
    %35 = vector.multi_reduction <maximumf>, %34, %cst_20 [0] : vector<16x8xf32> to vector<8xf32>
    %36 = vector.shape_cast %35 : vector<8xf32> to vector<1x8xf32>
    %c0_21 = arith.constant 0 : index
    %c2 = arith.constant 2 : index
    %c0_22 = arith.constant 0 : index
    %37 = vector.load %arg4[%c0_21, %c2, %c0_22] : memref<1x3x8xf32, #tpu.memory_space<vmem>>, vector<1x1x8xf32>
    %38 = vector.shape_cast %37 : vector<1x1x8xf32> to vector<1x8xf32>
    %39 = vector.shape_cast %36 : vector<1x8xf32> to vector<1x1x8xf32>
    tpu.vector_store %arg4[%c0_21, %c2, %c0_22], %39 {strides = array<i32>} : memref<1x3x8xf32, #tpu.memory_space<vmem>>, vector<1x1x8xf32>,
    return
  }
  func.func @transform_0(%arg0: i32) -> (i32, i32, i32) {
    %c0_i32 = arith.constant 0 : i32
    %c0_i32_0 = arith.constant 0 : i32
    %c0_i32_1 = arith.constant 0 : i32
    return %arg0, %c0_i32, %c0_i32_0 : i32, i32, i32
  }
  func.func @transform_1(%arg0: i32) -> (i32, i32) {
    %c0_i32 = arith.constant 0 : i32
    %c0_i32_0 = arith.constant 0 : i32
    %c0_i32_1 = arith.constant 0 : i32
    return %c0_i32, %c0_i32_0 : i32, i32
  }
  func.func @transform_2(%arg0: i32) -> (i32, i32, i32) {
    %c0_i32 = arith.constant 0 : i32
    %c0_i32_0 = arith.constant 0 : i32
    %c0_i32_1 = arith.constant 0 : i32
    return %arg0, %c0_i32, %c0_i32_0 : i32, i32, i32
  }
  func.func @transform_3(%arg0: i32) -> (i32, i32, i32) {
    %c0_i32 = arith.constant 0 : i32
    %c0_i32_0 = arith.constant 0 : i32
    %c0_i32_1 = arith.constant 0 : i32
    return %arg0, %c0_i32, %c0_i32_0 : i32, i32, i32
  }
}

</mosaic_0001>

<llo_original>
// kernel: tpu_custom_call.1
$region0: #{tpu_custom_call.1}
  #allocation0 [shape = 'u32[]', space=smem, size = 0x4, offset = 0x4, fixed_abs, tag = 'smem constant byte address 0x4 - core index']
  #allocation1 [shape = 'u32[144,128]{1,0:T(1,128)}', space=vmem, size = 0x12000, scoped, tag = 'internal scratch']
  %s0 = inlined_call_operand.vmem [shape: f32[2,32,8], index: 0, kind: input, shape index: {}]
  %s1 = inlined_call_operand.vmem [shape: f32[32,16], index: 1, kind: input, shape index: {}]
  %s2 = inlined_call_operand.vmem [shape: f32[2,16,8], index: 2, kind: output, shape index: {0}]
  %s3 = inlined_call_operand.vmem [shape: f32[2,3,8], index: 3, kind: output, shape index: {1}]
  %4 = xla_tuple %s2, %s3
  %s5 = sld [smem:[#allocation0]]
  $region49: #{tpu_custom_call.1} parent=0
    _
  %s7 = ssub.s32 1, %s5
  %s8 = scalar_select 0, %s7, %s5
  loop: start=0, step=1, limit=4
  $region2: #{tpu_custom_call.1} parent=0 // loop_pre_header
    _
  $region3: #{tpu_custom_call.1} parent=0 // loop_header
    %s10 = sphi 0, %s14
    %p11 = scmp.ge.s32.totalorder %s10, 4
    %s20 = sphi 0, %s22
    %s23 = sphi 0, %s20
    %s24 = sphi 0, %s23
    %s40 = sphi 0, %s24
    %s44 = sphi 0, %s44
    %s46 = sphi 0, %s44
    %s47 = sphi 0, %s46
    %s61 = sphi 0, %s47
    %s67 = sphi 0, %s69
    %s70 = sphi 0, %s67
    %s71 = sphi 0, %s70
    %s87 = sphi 0, %s71
    %s93 = sphi 0, %s95
    %s96 = sphi 0, %s93
    %s97 = sphi 0, %s96
    %s113 = sphi 0, %s97
  $region4: #{tpu_custom_call.1} parent=0 // loop_header_branch
    %13 = sbr.rel (%p11) target = $region8
  $region5: #{tpu_custom_call.1} parent=0 // loop_body
    %s15 = ssub.s32 %s10, 1
    %s16 = ssub.s32 %s10, 2
    %s17 = sadd.s32 %s10, 1
    %s18 = ssub.s32 %s10, %s17
    %p19 = scmp.eq.s32.totalorder %s18, 0
    %s21 = sadd.s32 %s20, 1
    %s22 = scalar_select %p19, %s20, %s21
    %p25 = pneg %p19
    %p26 = scmp.eq.s32.totalorder %s10, 1
    %p27 = por %p25, %p26
    %p28 = scmp.ne.s32.totalorder %s20, %s23
    %p29 = scmp.eq.s32.totalorder %s10, 0
    %p30 = por %p28, %p29
    %p31 = scmp.ne.s32.totalorder %s20, %s23
    %p32 = scmp.eq.s32.totalorder %s15, 1
    %p33 = por %p31, %p32
    %p34 = scmp.ne.s32.totalorder %s23, %s24
    %p35 = scmp.eq.s32.totalorder %s15, 0
    %p36 = por %p34, %p35
    %p37 = scmp.ne.s32.totalorder %s23, %s24
    %p38 = scmp.eq.s32.totalorder %s16, 1
    %p39 = por %p37, %p38
    %p41 = scmp.ne.s32.totalorder %s24, %s40
    %p42 = scmp.eq.s32.totalorder %s16, 0
    %p43 = por %p41, %p42
    %s45 = sadd.s32 %s44, 1
    %p48 = scmp.eq.s32.totalorder %s10, 1
    %p49 = scmp.ne.s32.totalorder %s44, %s46
    %p50 = scmp.eq.s32.totalorder %s10, 0
    %p51 = por %p49, %p50
    %p52 = scmp.ne.s32.totalorder %s44, %s46
    %p53 = scmp.eq.s32.totalorder %s15, 1
    %p54 = por %p52, %p53
    %p55 = scmp.ne.s32.totalorder %s46, %s47
    %p56 = scmp.eq.s32.totalorder %s15, 0
    %p57 = por %p55, %p56
    %p58 = scmp.ne.s32.totalorder %s46, %s47
    %p59 = scmp.eq.s32.totalorder %s16, 1
    %p60 = por %p58, %p59
    %p62 = scmp.ne.s32.totalorder %s47, %s61
    %p63 = scmp.eq.s32.totalorder %s16, 0
    %p64 = por %p62, %p63
    %s65 = ssub.s32 %s10, %s17
    %p66 = scmp.eq.s32.totalorder %s65, 0
    %s68 = sadd.s32 %s67, 1
    %s69 = scalar_select %p66, %s67, %s68
    %p72 = pneg %p66
    %p73 = scmp.eq.s32.totalorder %s10, 1
    %p74 = por %p72, %p73
    %p75 = scmp.ne.s32.totalorder %s67, %s70
    %p76 = scmp.eq.s32.totalorder %s10, 0
    %p77 = por %p75, %p76
    %p78 = scmp.ne.s32.totalorder %s67, %s70
    %p79 = scmp.eq.s32.totalorder %s15, 1
    %p80 = por %p78, %p79
    %p81 = scmp.ne.s32.totalorder %s70, %s71
    %p82 = scmp.eq.s32.totalorder %s15, 0
    %p83 = por %p81, %p82
    %p84 = scmp.ne.s32.totalorder %s70, %s71
    %p85 = scmp.eq.s32.totalorder %s16, 1
    %p86 = por %p84, %p85
    %p88 = scmp.ne.s32.totalorder %s71, %s87
    %p89 = scmp.eq.s32.totalorder %s16, 0
    %p90 = por %p88, %p89
    %s91 = ssub.s32 %s10, %s17
    %p92 = scmp.eq.s32.totalorder %s91, 0
    %s94 = sadd.s32 %s93, 1
    %s95 = scalar_select %p92, %s93, %s94
    %p98 = pneg %p92
    %p99 = scmp.eq.s32.totalorder %s10, 1
    %p100 = por %p98, %p99
    %p101 = scmp.ne.s32.totalorder %s93, %s96
    %p102 = scmp.eq.s32.totalorder %s10, 0
    %p103 = por %p101, %p102
    %p104 = scmp.ne.s32.totalorder %s93, %s96
    %p105 = scmp.eq.s32.totalorder %s15, 1
    %p106 = por %p104, %p105
    %p107 = scmp.ne.s32.totalorder %s96, %s97
    %p108 = scmp.eq.s32.totalorder %s15, 0
    %p109 = por %p107, %p108
    %p110 = scmp.ne.s32.totalorder %s96, %s97
    %p111 = scmp.eq.s32.totalorder %s16, 1
    %p112 = por %p110, %p111
    %p114 = scmp.ne.s32.totalorder %s97, %s113
    %p115 = scmp.eq.s32.totalorder %s16, 0
    %p116 = por %p114, %p115
    %p117 = scmp.le.s32.totalorder 1, %s10
    %p118 = scmp.lt.s32.totalorder %s10, 3
    %p119 = pnand %p117, %p118
    %p120 = pneg %p119
    // Predicated region
    $region9: #{tpu_custom_call.1} parent=5 // pred_check
      _
    $region10: #{tpu_custom_call.1} parent=5 // pred_check_branch
      %122 = sbr.rel (%p119) target = $region12
    $region11: #{tpu_custom_call.1} parent=5 // pred_region
      %s123 = ssub.s32 %s10, 1
      // Predicated region
      $region13: #{tpu_custom_call.1} parent=11 // pred_check
        %p124 = pneg %p57
      $region14: #{tpu_custom_call.1} parent=11 // pred_check_branch
        %126 = sbr.rel (%p124) target = $region16
      $region15: #{tpu_custom_call.1} parent=11 // pred_region
        _
      $region16: #{tpu_custom_call.1} parent=11 // pred_fallthru
        _
    $region12: #{tpu_custom_call.1} parent=5 // pred_fallthru
      _
    %p127 = scmp.lt.s32.totalorder %s10, 2
    // Predicated region
    $region17: #{tpu_custom_call.1} parent=5 // pred_check
      %p128 = pneg %p127
    $region18: #{tpu_custom_call.1} parent=5 // pred_check_branch
      %130 = sbr.rel (%p128) target = $region20
    $region19: #{tpu_custom_call.1} parent=5 // pred_region
      // Predicated region
      $region21: #{tpu_custom_call.1} parent=19 // pred_check
        %p131 = pneg %p30
      $region22: #{tpu_custom_call.1} parent=19 // pred_check_branch
        %133 = sbr.rel (%p131) target = $region24
      $region23: #{tpu_custom_call.1} parent=19 // pred_region
        %p134 = scmp.lt.s32.totalorder %s10, 1
        %s135 = scalar_select %p134, %s10, 1
        %s136 = smul.addr %s135, 4
        %s137 = smul.addr %s136, 8
        %s138 = scalar_lea.vmem %s0, %s137
      $region24: #{tpu_custom_call.1} parent=19 // pred_fallthru
        _
    $region20: #{tpu_custom_call.1} parent=5 // pred_fallthru
      _
    %p139 = scmp.le.s32.totalorder 1, %s10
    %p140 = scmp.lt.s32.totalorder %s10, 3
    %p141 = pnand %p139, %p140
    %p142 = pneg %p141
    // Predicated region
    $region25: #{tpu_custom_call.1} parent=5 // pred_check
      _
    $region26: #{tpu_custom_call.1} parent=5 // pred_check_branch
      %144 = sbr.rel (%p141) target = $region28
    $region27: #{tpu_custom_call.1} parent=5 // pred_region
      %s145 = ssub.s32 %s10, 1
      %p146 = scmp.lt.s32.totalorder %s15, 1
      %s147 = scalar_select %p146, %s15, 1
      %s148 = smul.addr %s147, 4
      %s149 = smul.addr %s148, 8
      %s150 = scalar_lea.vmem %s0, %s149
      %p151 = pneg %p36
      %p152 = pneg %p33
      %p153 = pneg %p57
      %p154 = pneg %p54
      %p155 = pneg %p83
      %p156 = pneg %p80
      %p157 = scmp.lt.s32.totalorder %s15, 1
      %s158 = scalar_select %p157, %s15, 1
      %s159 = smul.addr %s158, 2
      %s160 = smul.addr %s159, 8
      %s161 = scalar_lea.vmem %s2, %s160
      %p162 = pneg %p109
      %p163 = pneg %p106
      %p164 = scmp.lt.s32.totalorder %s15, 1
      %s165 = scalar_select %p164, %s15, 1
      %s166 = smul.addr %s165, 4
      %s167 = scalar_lea.vmem %s3, %s166
      %p168 = scmp.lt.s32.totalorder %s15, 1
      %s169 = scalar_select %p168, %s15, 1
      %s170 = smul.addr %s169, 4
      %s171 = smul.addr %s170, 8
      %s172 = scalar_lea.vmem %s0, %s171
      %p173 = scmp.lt.s32.totalorder %s15, 1
      %s174 = scalar_select %p173, %s15, 1
      %s175 = smul.addr %s174, 2
      %s176 = smul.addr %s175, 8
      %s177 = scalar_lea.vmem %s2, %s176
      %p178 = scmp.lt.s32.totalorder %s15, 1
      %s179 = scalar_select %p178, %s15, 1
      %s180 = smul.addr %s179, 4
      %s181 = scalar_lea.vmem %s3, %s180
      %v182 = vld [vmem:[%s172] sm:$0xff]
      %v183 = vld [vmem:[%s172 + $0x8] sm:$0xff]
      %v184 = vld [vmem:[%s172 + $0x10] sm:$0xff]
      %v185 = vld [vmem:[%s172 + $0x18] sm:$0xff]
      %186 = vxpose.xlu0.b32.start [1/16] %v182, 128
      %187 = vxpose.xlu0.b32.cont [2/16] %v183, 128
      %188 = vxpose.xlu0.b32.cont [3/16] %v184, 128
      %189 = vxpose.xlu0.b32.cont [4/16] %v185, 128
      %190 = vxpose.xlu0.b32.cont [5/16] 0.0, 128
      %191 = vxpose.xlu0.b32.cont [6/16] 0.0, 128
      %192 = vxpose.xlu0.b32.cont [7/16] 0.0, 128
      %193 = vxpose.xlu0.b32.cont [8/16] 0.0, 128
      %194 = vxpose.xlu0.b32.cont [9/16] 0.0, 128
      %195 = vxpose.xlu0.b32.cont [10/16] 0.0, 128
      %196 = vxpose.xlu0.b32.cont [11/16] 0.0, 128
      %197 = vxpose.xlu0.b32.cont [12/16] 0.0, 128
      %198 = vxpose.xlu0.b32.cont [13/16] 0.0, 128
      %199 = vxpose.xlu0.b32.cont [14/16] 0.0, 128
      %200 = vxpose.xlu0.b32.cont [15/16] 0.0, 128
      %201 = vxpose.xlu0.b32.end [16/16] 0.0, 128
      %v202 = vpop.trf.xlu0
      %v203 = vpop.trf.xlu0
      %v204 = vpop.trf.xlu0
      %v205 = vpop.trf.xlu0
      %v206 = vpop.trf.xlu0
      %v207 = vpop.trf.xlu0
      %v208 = vpop.trf.xlu0
      %v209 = vpop.trf.xlu0
      %v210 = vpop.trf.xlu0
      %v211 = vpop.trf.xlu0
      %v212 = vpop.trf.xlu0
      %v213 = vpop.trf.xlu0
      %v214 = vpop.trf.xlu0
      %v215 = vpop.trf.xlu0
      %v216 = vpop.trf.xlu0
      %v217 = vpop.trf.xlu0
      %v218 = vld [vmem:[%s1] sm:$0xff]
      %v219 = vld [vmem:[%s1 + $0x8] sm:$0xff]
      %v220 = vld [vmem:[%s1 + $0x10] sm:$0xff]
      %v221 = vld [vmem:[%s1 + $0x18] sm:$0xff]
      %vm222 = vcmask 261120
      %v224 = vsel %vm222, %v202, 0
      %226 = vmatprep.subr.mxu0 0.0
      %227 = vmatpush1.msra.mxu0 %v218
      %228 = vmatprep.subr.mxu0 0.0
      %229 = vmatpush1.msra.mxu0 %v219
      %230 = vmatprep.subr.mxu0 0.0
      %231 = vmatpush1.msra.mxu0 %v220
      %232 = vmatprep.subr.mxu0 0.0
      %233 = vmatpush1.msra.mxu0 %v221
      %234 = vmatprep.subr.mxu0 0.0
      %235 = vmatpush1.msra.mxu0 0.0
      %236 = vmatprep.subr.mxu0 0.0
      %237 = vmatpush1.msra.mxu0 0.0
      %238 = vmatprep.subr.mxu0 0.0
      %239 = vmatpush1.msra.mxu0 0.0
      %240 = vmatprep.subr.mxu0 0.0
      %241 = vmatpush1.msra.mxu0 0.0
      %242 = vmatprep.subr.mxu0 0.0
      %243 = vmatpush1.msra.mxu0 0.0
      %244 = vmatprep.subr.mxu0 0.0
      %245 = vmatpush1.msra.mxu0 0.0
      %246 = vmatprep.subr.mxu0 0.0
      %247 = vmatpush1.msra.mxu0 0.0
      %248 = vmatprep.subr.mxu0 0.0
      %249 = vmatpush1.msra.mxu0 0.0
      %250 = vmatprep.subr.mxu0 0.0
      %251 = vmatpush1.msra.mxu0 0.0
      %252 = vmatprep.subr.mxu0 0.0
      %253 = vmatpush1.msra.mxu0 0.0
      %254 = vmatprep.subr.mxu0 0.0
      %255 = vmatpush1.msra.mxu0 0.0
      %256 = vmatprep.subr.mxu0 0.0
      %257 = vmatpush1.msra.mxu0 0.0
      %258 = vmatprep.subr.mxu0 0.0
      %259 = vmatpush1.msra.mxu0 0.0
      %260 = vmatprep.subr.mxu0 0.0
      %261 = vmatpush1.msra.mxu0 0.0
      %262 = vmatprep.subr.mxu0 0.0
      %263 = vmatpush1.msra.mxu0 0.0
      %264 = vmatprep.subr.mxu0 0.0
      %265 = vmatpush1.msra.mxu0 0.0
      %266 = vmatprep.subr.mxu0 0.0
      %267 = vmatpush1.msra.mxu0 0.0
      %268 = vmatprep.subr.mxu0 0.0
      %269 = vmatpush1.msra.mxu0 0.0
      %270 = vmatprep.subr.mxu0 0.0
      %271 = vmatpush1.msra.mxu0 0.0
      %272 = vmatprep.subr.mxu0 0.0
      %273 = vmatpush1.msra.mxu0 0.0
      %274 = vmatprep.subr.mxu0 0.0
      %275 = vmatpush1.msra.mxu0 0.0
      %276 = vmatprep.subr.mxu0 0.0
      %277 = vmatpush1.msra.mxu0 0.0
      %278 = vmatprep.subr.mxu0 0.0
      %279 = vmatpush1.msra.mxu0 0.0
      %280 = vmatprep.subr.mxu0 0.0
      %281 = vmatpush1.msra.mxu0 0.0
      %282 = vmatprep.subr.mxu0 0.0
      %283 = vmatpush1.msra.mxu0 0.0
      %284 = vmatprep.subr.mxu0 0.0
      %285 = vmatpush1.msra.mxu0 0.0
      %286 = vmatprep.subr.mxu0 0.0
      %287 = vmatpush1.msra.mxu0 0.0
      %288 = vmatprep.subr.mxu0 0.0
      %289 = vmatpush1.msra.mxu0 0.0
      %290 = vmatprep.mubr.f32.mxu0 0.0
      %291 = vmatmul.mubr.f32.gmra.mrb[0].mxu0 %v224
      %v292 = vpop.f32.mrb[0].mxu0
      %v293 = vadd.f32 0.0, %v292
      %v294 = vpop.f32.mrb[0].mxu0
      %295 = vdwg.mxu0
      %v296 = vadd.f32 %v293, 0.0
      %v298 = vrot.slane %v293, 7
      %299 = vrot.lane.b32.xlu0 %v298, 120
      %v300 = vpop.permute.xlu0 %299
      %vm302 = vcmask 1040384
      %v303 = vsel %vm302, 0.0, %v300
      %v304 = vsel %vm302, %v300, 0.0
      %v305 = vadd.f32 %v296, %v303
      %v306 = vadd.f32 %v304, 0.0
      %vm307 = vcmask 64512
      %308 = vst.msk [vmem:[%s177] sm:$0xff] %vm307, %v305
      %309 = vst.msk [vmem:[%s177 + $0x8] sm:$0xff] %vm307, %v306
      %v310 = vlaneseq
      %v311 = vshrl.u32 %v310, 7
      %v312 = vadd.s32 %v311, 8
      %vm313 = vcmp.lt.s32.totalorder %v311, 9
      %vm314 = vcmp.lt.s32.totalorder %v312, 9
      %v315 = vsel %vm307, %v305, 0.0
      %v316 = vsel %vm307, %v306, 0.0
      %v317 = vadd.f32 %v315, %v316
      %v318 = vrot.slane %v317, 4
      %v319 = vadd.f32 %v317, %v318
      %v320 = vrot.slane %v319, 2
      %v321 = vadd.f32 %v319, %v320
      %v322 = vrot.slane %v321, 1
      %v323 = vadd.f32 %v321, %v322
      %vm324 = vcmask 57344
      %325 = vst.msk [vmem:[%s181] sm:$0x1] %vm324, %v323
      %v326 = vsel %vm313, %v305, inf
      %v327 = vsel %vm314, %v306, inf
      %v328 = vsel %vm307, %v326, inf
      %v329 = vsel %vm307, %v327, inf
      %v330 = vmin.f32 %v328, %v329
      %v331 = vrot.slane %v330, 4
      %v332 = vmin.f32 %v330, %v331
      %v333 = vrot.slane %v332, 2
      %v334 = vmin.f32 %v332, %v333
      %v335 = vrot.slane %v334, 1
      %v336 = vmin.f32 %v334, %v335
      %337 = vst.msk [vmem:[%s181 + $0x1] sm:$0x1] %vm324, %v336
      %v338 = vsel %vm313, %v305, -inf
      %v339 = vsel %vm314, %v306, -inf
      %v340 = vsel %vm307, %v338, -inf
      %v341 = vsel %vm307, %v339, -inf
      %v342 = vmax.f32 %v340, %v341
      %v343 = vrot.slane %v342, 4
      %v344 = vmax.f32 %v342, %v343
      %v345 = vrot.slane %v344, 2
      %v346 = vmax.f32 %v344, %v345
      %v347 = vrot.slane %v346, 1
      %v348 = vmax.f32 %v346, %v347
      %349 = vst.msk [vmem:[%s181 + $0x2] sm:$0x1] %vm324, %v348
      %p350 = scmp.lt.s32.totalorder %s15, 1
      %s351 = scalar_select %p350, %s15, 1
      %s352 = smul.addr %s351, 2
      %s353 = smul.addr %s352, 8
      %s354 = scalar_lea.vmem %s2, %s353
      %p355 = scmp.lt.s32.totalorder %s15, 1
      %s356 = scalar_select %p355, %s15, 1
      %s357 = smul.addr %s356, 4
      %s358 = scalar_lea.vmem %s3, %s357
      // Predicated region
      $region29: #{tpu_custom_call.1} parent=27 // pred_check
        %p359 = pneg %p80
      $region30: #{tpu_custom_call.1} parent=27 // pred_check_branch
        %361 = sbr.rel (%p359) target = $region32
      $region31: #{tpu_custom_call.1} parent=27 // pred_region
        _
      $region32: #{tpu_custom_call.1} parent=27 // pred_fallthru
        _
      // Predicated region
      $region33: #{tpu_custom_call.1} parent=27 // pred_check
        %p362 = pneg %p106
      $region34: #{tpu_custom_call.1} parent=27 // pred_check_branch
        %364 = sbr.rel (%p362) target = $region36
      $region35: #{tpu_custom_call.1} parent=27 // pred_region
        _
      $region36: #{tpu_custom_call.1} parent=27 // pred_fallthru
        _
    $region28: #{tpu_custom_call.1} parent=5 // pred_fallthru
      _
    %p365 = scmp.le.s32.totalorder 2, %s10
    // Predicated region
    $region37: #{tpu_custom_call.1} parent=5 // pred_check
      %p366 = pneg %p365
    $region38: #{tpu_custom_call.1} parent=5 // pred_check_branch
      %368 = sbr.rel (%p366) target = $region40
    $region39: #{tpu_custom_call.1} parent=5 // pred_region
      %s369 = ssub.s32 %s10, 2
      // Predicated region
      $region41: #{tpu_custom_call.1} parent=39 // pred_check
        %p370 = pneg %p86
      $region42: #{tpu_custom_call.1} parent=39 // pred_check_branch
        %372 = sbr.rel (%p370) target = $region44
      $region43: #{tpu_custom_call.1} parent=39 // pred_region
        %p373 = scmp.lt.s32.totalorder %s16, 1
        %s374 = scalar_select %p373, %s16, 1
        %s375 = smul.addr %s374, 2
        %s376 = smul.addr %s375, 8
        %s377 = scalar_lea.vmem %s2, %s376
      $region44: #{tpu_custom_call.1} parent=39 // pred_fallthru
        _
      // Predicated region
      $region45: #{tpu_custom_call.1} parent=39 // pred_check
        %p378 = pneg %p112
      $region46: #{tpu_custom_call.1} parent=39 // pred_check_branch
        %380 = sbr.rel (%p378) target = $region48
      $region47: #{tpu_custom_call.1} parent=39 // pred_region
        %p381 = scmp.lt.s32.totalorder %s16, 1
        %s382 = scalar_select %p381, %s16, 1
        %s383 = smul.addr %s382, 4
        %s384 = scalar_lea.vmem %s3, %s383
      $region48: #{tpu_custom_call.1} parent=39 // pred_fallthru
        _
    $region40: #{tpu_custom_call.1} parent=5 // pred_fallthru
      _
  $region6: #{tpu_custom_call.1} parent=0 // loop_footer
    %s14 = sadd.s32 1, %s10
  $region7: #{tpu_custom_call.1} parent=0 // loop_footer_branch
    %9 = sbr.rel target = $region3
  $region8: #{tpu_custom_call.1} parent=0 // loop_exit
    _

</llo_original>
